<compile_context>
chip_gen: v5e
topology: v5e:2x2
jax: 0.10.0
libtpu: 0.0.40
codegen_flags: <defaults>
</compile_context>

<pallas_src>
import jax
import jax.numpy as jnp
from jax.experimental import pallas as pl
from jax.experimental.pallas import tpu as pltpu


def _attention_kernel(x_ref, w1t_ref, b1_ref, w2_ref, out_ref):
    """One grid step: TG groups.

    x_ref   : (TG, N, D) f32
    w1t_ref : (H, D)     f32   -- W1 transposed (packed offline)
    b1_ref  : (H, 1)     f32
    w2_ref  : (H, 1)     f32
    out_ref : (TG, N)    f32   -- per-group softmax attention weights
    """
    tg = x_ref.shape[0]

    # Hoisted parameter loads (resident across the unrolled group loop).
    w1t = w1t_ref[...]          # (H, D)
    b1 = b1_ref[...]            # (H, 1)
    w2 = w2_ref[...]            # (H, 1)

    for g in range(tg):         # static unroll over the groups in this block
        xg = x_ref[g]           # (N, D)

        # h^T directly: contract D with D so the MXU output already has N on
        # the lane axis (no in-kernel XLU transpose).  Dropout(p=0) = identity.
        ht = jax.lax.dot_general(
            w1t, xg,
            dimension_numbers=(((1,), (1,)), ((), ())),
            preferred_element_type=jnp.float32,
        )                                                    # (H, N)
        ht = jnp.maximum(ht + b1, 0.0)                       # bias + ReLU

        # Linear(16, 1) as a VPU multiply + sublane reduce (skips a 1-column
        # MXU matmul).  b2 omitted: a constant logit shift cancels in softmax.
        logits = jnp.sum(ht * w2, axis=0, keepdims=True)     # (1, N)

        # Numerically-stable per-group softmax == softmax(out.view(1, -1)).
        m = jnp.max(logits, axis=1, keepdims=True)
        e = jnp.exp(logits - m)
        s = jnp.sum(e, axis=1, keepdims=True)
        w = e * pl.reciprocal(s, approx=False)               # (1, N)

        out_ref[pl.ds(g, 1), :] = w


def pack_params(w1, b1, w2, b2=None):
    """One-time offline packing of AttentionLayer parameters for the kernel.

    w1: (D, H), b1: (H,)/(1, H), w2: (H, 1)/(1, H).  Returns W1^T (H, D),
    b1 (H, 1), w2 (H, 1).  b2 is dropped: softmax is invariant to a constant
    shift of all logits.
    """
    _, hdim = w1.shape
    w1t = jnp.transpose(w1).astype(jnp.float32)            # (H, D)
    b1c = jnp.reshape(b1, (hdim, 1)).astype(jnp.float32)   # (H, 1)
    w2c = jnp.reshape(w2, (hdim, 1)).astype(jnp.float32)   # (H, 1)
    del b2  # mathematically a no-op under softmax
    return w1t, b1c, w2c


def attention_layer_batched(x, w1t, b1, w2, *, groups_per_step=8):
    """x: (G, N, D) f32 -> per-group attention weights of shape (G, N).

    One pallas_call; the group axis is the (parallel) grid axis, TG groups
    per step.
    """
    g, n, d = x.shape
    h = w1t.shape[0]

    tg = max(1, min(groups_per_step, g))
    while g % tg:               # largest block size <= groups_per_step dividing G
        tg -= 1

    return pl.pallas_call(
        _attention_kernel,
        out_shape=jax.ShapeDtypeStruct((g, n), jnp.float32),
        grid=(g // tg,),
        in_specs=[
            pl.BlockSpec((tg, n, d), lambda i: (i, 0, 0)),   # x: new block per step
            pl.BlockSpec((h, d), lambda i: (0, 0)),          # params: VMEM-resident
            pl.BlockSpec((h, 1), lambda i: (0, 0)),
            pl.BlockSpec((h, 1), lambda i: (0, 0)),
        ],
        out_specs=pl.BlockSpec((tg, n), lambda i: (i, 0)),   # lane-dense (TG, N) slab
        compiler_params=pltpu.CompilerParams(
            dimension_semantics=("parallel",),               # shards across v7x's 2 TCs
        ),
    )(x, w1t, b1, w2)


def attention_layer(x, w1t, b1, w2):
    """Single-group path matching the PyTorch module exactly: (N, D) -> (1, N)."""
    return attention_layer_batched(x[None], w1t, b1, w2, groups_per_step=1)


def _reference(x, w1, b1, w2, b2):
    h = jnp.maximum(x @ w1 + b1, 0.0)
    logits = (h @ w2 + b2).reshape(1, -1)
    return jax.nn.softmax(logits, axis=1)


if __name__ == "__main__":
    embedding_dim = 32
    hidden = 16
    n_members = 8    # rows per group fed to the attention layer
    n_groups = 16    # groups folded into one kernel launch

    key = jax.random.PRNGKey(0)
    kx, kw1, kb1, kw2, kb2 = jax.random.split(key, 5)

    x = jax.random.normal(kx, (n_groups, n_members, embedding_dim), dtype=jnp.float32)

    # Deterministic synthetic parameters (PyTorch-like uniform init ranges).
    bound1 = 1.0 / (embedding_dim ** 0.5)
    w1 = jax.random.uniform(kw1, (embedding_dim, hidden), jnp.float32, -bound1, bound1)
    b1 = jax.random.uniform(kb1, (1, hidden), jnp.float32, -bound1, bound1)
    bound2 = 1.0 / (hidden ** 0.5)
    w2 = jax.random.uniform(kw2, (hidden, 1), jnp.float32, -bound2, bound2)
    b2 = jax.random.uniform(kb2, (1, 1), jnp.float32, -bound2, bound2)

    w1t, b1c, w2c = pack_params(w1, b1, w2, b2)

    # Batched path: one launch, grid over group blocks.
    out = attention_layer_batched(x, w1t, b1c, w2c, groups_per_step=8)
    jax.block_until_ready(out)

    ref = jax.vmap(lambda xg: _reference(xg, w1, b1, w2, b2)[0])(x)   # (G, N)
    assert out.shape == (n_groups, n_members)
    assert jnp.allclose(out, ref, atol=1e-5, rtol=1e-5)
    assert jnp.allclose(jnp.sum(out, axis=1), jnp.ones((n_groups,)), atol=1e-5)

    # Single-group path matching the original module signature: (N, D) -> (1, N).
    out1 = attention_layer(x[0], w1t, b1c, w2c)
    jax.block_until_ready(out1)
    assert out1.shape == (1, n_members)
    assert jnp.allclose(out1, _reference(x[0], w1, b1, w2, b2), atol=1e-5, rtol=1e-5)

    print("KERNEL_OK")
</pallas_src>

<mosaic_0001>
module attributes {stable_mosaic.version = 11 : i64} {
  func.func @_attention_kernel(%arg0: i32, %arg1: memref<8x8x32xf32, #tpu.memory_space<vmem>>, %arg2: memref<16x32xf32, #tpu.memory_space<vmem>>, %arg3: memref<16x1xf32, #tpu.memory_space<vmem>>, %arg4: memref<16x1xf32, #tpu.memory_space<vmem>>, %arg5: memref<8x8xf32, #tpu.memory_space<vmem>>) attributes {dimension_semantics = [#tpu.dimension_semantics<parallel>], iteration_bounds = array<i64: 2>, scalar_prefetch = 0 : i64, scratch_operands = 0 : i64, tpu.core_type = #tpu.core_type<tc>, window_params = [{transform_indices = @transform_0, window_bounds = array<i64: 8, 8, 32>}, {pipeline_mode = #tpu.pipeline_mode<synchronous>, transform_indices = @transform_1, window_bounds = array<i64: 16, 32>}, {pipeline_mode = #tpu.pipeline_mode<synchronous>, transform_indices = @transform_2, window_bounds = array<i64: 16, 1>}, {pipeline_mode = #tpu.pipeline_mode<synchronous>, transform_indices = @transform_3, window_bounds = array<i64: 16, 1>}, {transform_indices = @transform_4, window_bounds = array<i64: 8, 8>}]} {
    %c0 = arith.constant 0 : index
    %c0_0 = arith.constant 0 : index
    %0 = vector.load %arg2[%c0, %c0_0] : memref<16x32xf32, #tpu.memory_space<vmem>>, vector<16x32xf32>
    %c0_1 = arith.constant 0 : index
    %c0_2 = arith.constant 0 : index
    %1 = vector.load %arg3[%c0_1, %c0_2] : memref<16x1xf32, #tpu.memory_space<vmem>>, vector<16x1xf32>
    %c0_3 = arith.constant 0 : index
    %c0_4 = arith.constant 0 : index
    %2 = vector.load %arg4[%c0_3, %c0_4] : memref<16x1xf32, #tpu.memory_space<vmem>>, vector<16x1xf32>
    %c0_5 = arith.constant 0 : index
    %c0_6 = arith.constant 0 : index
    %c0_7 = arith.constant 0 : index
    %3 = vector.load %arg1[%c0_5, %c0_6, %c0_7] : memref<8x8x32xf32, #tpu.memory_space<vmem>>, vector<1x8x32xf32>
    %4 = vector.shape_cast %3 : vector<1x8x32xf32> to vector<8x32xf32>
    %cst = arith.constant dense<0.000000e+00> : vector<16x8xf32>
    %5 = tpu.matmul %0, %4, %cst {dimension_numbers = #tpu.dot_dimension_numbers<[1], [1], [0], [0], [0, 0, 1, 0], [], []>} : vector<16x32xf32>, vector<8x32xf32>, vector<16x8xf32> -> vector<16x8xf32>
    %6 = vector.broadcast %1 : vector<16x1xf32> to vector<16x8xf32>
    %7 = arith.addf %5, %6 : vector<16x8xf32>
    %cst_8 = arith.constant 0.000000e+00 : f32
    %8 = vector.broadcast %cst_8 : f32 to vector<16x8xf32>
    %9 = arith.maximumf %7, %8 : vector<16x8xf32>
    %10 = vector.broadcast %2 : vector<16x1xf32> to vector<16x8xf32>
    %11 = arith.mulf %9, %10 : vector<16x8xf32>
    %cst_9 = arith.constant dense<0.000000e+00> : vector<8xf32>
    %12 = vector.multi_reduction <add>, %11, %cst_9 [0] : vector<16x8xf32> to vector<8xf32>
    %13 = vector.shape_cast %12 : vector<8xf32> to vector<1x8xf32>
    %cst_10 = arith.constant dense<0xFF800000> : vector<1xf32>
    %14 = vector.multi_reduction <maximumf>, %13, %cst_10 [1] : vector<1x8xf32> to vector<1xf32>
    %15 = vector.shape_cast %14 : vector<1xf32> to vector<1x1xf32>
    %16 = vector.broadcast %15 : vector<1x1xf32> to vector<1x8xf32>
    %17 = arith.subf %13, %16 : vector<1x8xf32>
    %18 = math.exp %17 : vector<1x8xf32>
    %cst_11 = arith.constant dense<0.000000e+00> : vector<1xf32>
    %19 = vector.multi_reduction <add>, %18, %cst_11 [1] : vector<1x8xf32> to vector<1xf32>
    %20 = vector.shape_cast %19 : vector<1xf32> to vector<1x1xf32>
    %21 = tpu.reciprocal %20 : vector<1x1xf32> -> vector<1x1xf32>
    %22 = vector.broadcast %21 : vector<1x1xf32> to vector<1x8xf32>
    %23 = arith.mulf %18, %22 : vector<1x8xf32>
    %c0_12 = arith.constant 0 : index
    %c0_13 = arith.constant 0 : index
    %24 = vector.load %arg5[%c0_12, %c0_13] : memref<8x8xf32, #tpu.memory_space<vmem>>, vector<1x8xf32>
    tpu.vector_store %arg5[%c0_12, %c0_13], %23 {strides = array<i32>} : memref<8x8xf32, #tpu.memory_space<vmem>>, vector<1x8xf32>,
    %c1 = arith.constant 1 : index
    %c0_14 = arith.constant 0 : index
    %c0_15 = arith.constant 0 : index
    %25 = vector.load %arg1[%c1, %c0_14, %c0_15] : memref<8x8x32xf32, #tpu.memory_space<vmem>>, vector<1x8x32xf32>
    %26 = vector.shape_cast %25 : vector<1x8x32xf32> to vector<8x32xf32>
    %cst_16 = arith.constant dense<0.000000e+00> : vector<16x8xf32>
    %27 = tpu.matmul %0, %26, %cst_16 {dimension_numbers = #tpu.dot_dimension_numbers<[1], [1], [0], [0], [0, 0, 1, 0], [], []>} : vector<16x32xf32>, vector<8x32xf32>, vector<16x8xf32> -> vector<16x8xf32>
    %28 = vector.broadcast %1 : vector<16x1xf32> to vector<16x8xf32>
    %29 = arith.addf %27, %28 : vector<16x8xf32>
    %cst_17 = arith.constant 0.000000e+00 : f32
    %30 = vector.broadcast %cst_17 : f32 to vector<16x8xf32>
    %31 = arith.maximumf %29, %30 : vector<16x8xf32>
    %32 = vector.broadcast %2 : vector<16x1xf32> to vector<16x8xf32>
    %33 = arith.mulf %31, %32 : vector<16x8xf32>
    %cst_18 = arith.constant dense<0.000000e+00> : vector<8xf32>
    %34 = vector.multi_reduction <add>, %33, %cst_18 [0] : vector<16x8xf32> to vector<8xf32>
    %35 = vector.shape_cast %34 : vector<8xf32> to vector<1x8xf32>
    %cst_19 = arith.constant dense<0xFF800000> : vector<1xf32>
    %36 = vector.multi_reduction <maximumf>, %35, %cst_19 [1] : vector<1x8xf32> to vector<1xf32>
    %37 = vector.shape_cast %36 : vector<1xf32> to vector<1x1xf32>
    %38 = vector.broadcast %37 : vector<1x1xf32> to vector<1x8xf32>
    %39 = arith.subf %35, %38 : vector<1x8xf32>
    %40 = math.exp %39 : vector<1x8xf32>
    %cst_20 = arith.constant dense<0.000000e+00> : vector<1xf32>
    %41 = vector.multi_reduction <add>, %40, %cst_20 [1] : vector<1x8xf32> to vector<1xf32>
    %42 = vector.shape_cast %41 : vector<1xf32> to vector<1x1xf32>
    %43 = tpu.reciprocal %42 : vector<1x1xf32> -> vector<1x1xf32>
    %44 = vector.broadcast %43 : vector<1x1xf32> to vector<1x8xf32>
    %45 = arith.mulf %40, %44 : vector<1x8xf32>
    %c1_21 = arith.constant 1 : index
    %c0_22 = arith.constant 0 : index
    %46 = vector.load %arg5[%c1_21, %c0_22] : memref<8x8xf32, #tpu.memory_space<vmem>>, vector<1x8xf32>
    tpu.vector_store %arg5[%c1_21, %c0_22], %45 {strides = array<i32>} : memref<8x8xf32, #tpu.memory_space<vmem>>, vector<1x8xf32>,
    %c2 = arith.constant 2 : index
    %c0_23 = arith.constant 0 : index
    %c0_24 = arith.constant 0 : index
    %47 = vector.load %arg1[%c2, %c0_23, %c0_24] : memref<8x8x32xf32, #tpu.memory_space<vmem>>, vector<1x8x32xf32>
    %48 = vector.shape_cast %47 : vector<1x8x32xf32> to vector<8x32xf32>
    %cst_25 = arith.constant dense<0.000000e+00> : vector<16x8xf32>
    %49 = tpu.matmul %0, %48, %cst_25 {dimension_numbers = #tpu.dot_dimension_numbers<[1], [1], [0], [0], [0, 0, 1, 0], [], []>} : vector<16x32xf32>, vector<8x32xf32>, vector<16x8xf32> -> vector<16x8xf32>
    %50 = vector.broadcast %1 : vector<16x1xf32> to vector<16x8xf32>
    %51 = arith.addf %49, %50 : vector<16x8xf32>
    %cst_26 = arith.constant 0.000000e+00 : f32
    %52 = vector.broadcast %cst_26 : f32 to vector<16x8xf32>
    %53 = arith.maximumf %51, %52 : vector<16x8xf32>
    %54 = vector.broadcast %2 : vector<16x1xf32> to vector<16x8xf32>
    %55 = arith.mulf %53, %54 : vector<16x8xf32>
    %cst_27 = arith.constant dense<0.000000e+00> : vector<8xf32>
    %56 = vector.multi_reduction <add>, %55, %cst_27 [0] : vector<16x8xf32> to vector<8xf32>
    %57 = vector.shape_cast %56 : vector<8xf32> to vector<1x8xf32>
    %cst_28 = arith.constant dense<0xFF800000> : vector<1xf32>
    %58 = vector.multi_reduction <maximumf>, %57, %cst_28 [1] : vector<1x8xf32> to vector<1xf32>
    %59 = vector.shape_cast %58 : vector<1xf32> to vector<1x1xf32>
    %60 = vector.broadcast %59 : vector<1x1xf32> to vector<1x8xf32>
    %61 = arith.subf %57, %60 : vector<1x8xf32>
    %62 = math.exp %61 : vector<1x8xf32>
    %cst_29 = arith.constant dense<0.000000e+00> : vector<1xf32>
    %63 = vector.multi_reduction <add>, %62, %cst_29 [1] : vector<1x8xf32> to vector<1xf32>
    %64 = vector.shape_cast %63 : vector<1xf32> to vector<1x1xf32>
    %65 = tpu.reciprocal %64 : vector<1x1xf32> -> vector<1x1xf32>
    %66 = vector.broadcast %65 : vector<1x1xf32> to vector<1x8xf32>
    %67 = arith.mulf %62, %66 : vector<1x8xf32>
    %c2_30 = arith.constant 2 : index
    %c0_31 = arith.constant 0 : index
    %68 = vector.load %arg5[%c2_30, %c0_31] : memref<8x8xf32, #tpu.memory_space<vmem>>, vector<1x8xf32>
    tpu.vector_store %arg5[%c2_30, %c0_31], %67 {strides = array<i32>} : memref<8x8xf32, #tpu.memory_space<vmem>>, vector<1x8xf32>,
    %c3 = arith.constant 3 : index
    %c0_32 = arith.constant 0 : index
    %c0_33 = arith.constant 0 : index
    %69 = vector.load %arg1[%c3, %c0_32, %c0_33] : memref<8x8x32xf32, #tpu.memory_space<vmem>>, vector<1x8x32xf32>
    %70 = vector.shape_cast %69 : vector<1x8x32xf32> to vector<8x32xf32>
    %cst_34 = arith.constant dense<0.000000e+00> : vector<16x8xf32>
    %71 = tpu.matmul %0, %70, %cst_34 {dimension_numbers = #tpu.dot_dimension_numbers<[1], [1], [0], [0], [0, 0, 1, 0], [], []>} : vector<16x32xf32>, vector<8x32xf32>, vector<16x8xf32> -> vector<16x8xf32>
    %72 = vector.broadcast %1 : vector<16x1xf32> to vector<16x8xf32>
    %73 = arith.addf %71, %72 : vector<16x8xf32>
    %cst_35 = arith.constant 0.000000e+00 : f32
    %74 = vector.broadcast %cst_35 : f32 to vector<16x8xf32>
    %75 = arith.maximumf %73, %74 : vector<16x8xf32>
    %76 = vector.broadcast %2 : vector<16x1xf32> to vector<16x8xf32>
    %77 = arith.mulf %75, %76 : vector<16x8xf32>
    %cst_36 = arith.constant dense<0.000000e+00> : vector<8xf32>
    %78 = vector.multi_reduction <add>, %77, %cst_36 [0] : vector<16x8xf32> to vector<8xf32>
    %79 = vector.shape_cast %78 : vector<8xf32> to vector<1x8xf32>
    %cst_37 = arith.constant dense<0xFF800000> : vector<1xf32>
    %80 = vector.multi_reduction <maximumf>, %79, %cst_37 [1] : vector<1x8xf32> to vector<1xf32>
    %81 = vector.shape_cast %80 : vector<1xf32> to vector<1x1xf32>
    %82 = vector.broadcast %81 : vector<1x1xf32> to vector<1x8xf32>
    %83 = arith.subf %79, %82 : vector<1x8xf32>
    %84 = math.exp %83 : vector<1x8xf32>
    %cst_38 = arith.constant dense<0.000000e+00> : vector<1xf32>
    %85 = vector.multi_reduction <add>, %84, %cst_38 [1] : vector<1x8xf32> to vector<1xf32>
    %86 = vector.shape_cast %85 : vector<1xf32> to vector<1x1xf32>
    %87 = tpu.reciprocal %86 : vector<1x1xf32> -> vector<1x1xf32>
    %88 = vector.broadcast %87 : vector<1x1xf32> to vector<1x8xf32>
    %89 = arith.mulf %84, %88 : vector<1x8xf32>
    %c3_39 = arith.constant 3 : index
    %c0_40 = arith.constant 0 : index
    %90 = vector.load %arg5[%c3_39, %c0_40] : memref<8x8xf32, #tpu.memory_space<vmem>>, vector<1x8xf32>
    tpu.vector_store %arg5[%c3_39, %c0_40], %89 {strides = array<i32>} : memref<8x8xf32, #tpu.memory_space<vmem>>, vector<1x8xf32>,
    %c4 = arith.constant 4 : index
    %c0_41 = arith.constant 0 : index
    %c0_42 = arith.constant 0 : index
    %91 = vector.load %arg1[%c4, %c0_41, %c0_42] : memref<8x8x32xf32, #tpu.memory_space<vmem>>, vector<1x8x32xf32>
    %92 = vector.shape_cast %91 : vector<1x8x32xf32> to vector<8x32xf32>
    %cst_43 = arith.constant dense<0.000000e+00> : vector<16x8xf32>
    %93 = tpu.matmul %0, %92, %cst_43 {dimension_numbers = #tpu.dot_dimension_numbers<[1], [1], [0], [0], [0, 0, 1, 0], [], []>} : vector<16x32xf32>, vector<8x32xf32>, vector<16x8xf32> -> vector<16x8xf32>
    %94 = vector.broadcast %1 : vector<16x1xf32> to vector<16x8xf32>
    %95 = arith.addf %93, %94 : vector<16x8xf32>
    %cst_44 = arith.constant 0.000000e+00 : f32
    %96 = vector.broadcast %cst_44 : f32 to vector<16x8xf32>
    %97 = arith.maximumf %95, %96 : vector<16x8xf32>
    %98 = vector.broadcast %2 : vector<16x1xf32> to vector<16x8xf32>
    %99 = arith.mulf %97, %98 : vector<16x8xf32>
    %cst_45 = arith.constant dense<0.000000e+00> : vector<8xf32>
    %100 = vector.multi_reduction <add>, %99, %cst_45 [0] : vector<16x8xf32> to vector<8xf32>
    %101 = vector.shape_cast %100 : vector<8xf32> to vector<1x8xf32>
    %cst_46 = arith.constant dense<0xFF800000> : vector<1xf32>
    %102 = vector.multi_reduction <maximumf>, %101, %cst_46 [1] : vector<1x8xf32> to vector<1xf32>
    %103 = vector.shape_cast %102 : vector<1xf32> to vector<1x1xf32>
    %104 = vector.broadcast %103 : vector<1x1xf32> to vector<1x8xf32>
    %105 = arith.subf %101, %104 : vector<1x8xf32>
    %106 = math.exp %105 : vector<1x8xf32>
    %cst_47 = arith.constant dense<0.000000e+00> : vector<1xf32>
    %107 = vector.multi_reduction <add>, %106, %cst_47 [1] : vector<1x8xf32> to vector<1xf32>
    %108 = vector.shape_cast %107 : vector<1xf32> to vector<1x1xf32>
    %109 = tpu.reciprocal %108 : vector<1x1xf32> -> vector<1x1xf32>
    %110 = vector.broadcast %109 : vector<1x1xf32> to vector<1x8xf32>
    %111 = arith.mulf %106, %110 : vector<1x8xf32>
    %c4_48 = arith.constant 4 : index
    %c0_49 = arith.constant 0 : index
    %112 = vector.load %arg5[%c4_48, %c0_49] : memref<8x8xf32, #tpu.memory_space<vmem>>, vector<1x8xf32>
    tpu.vector_store %arg5[%c4_48, %c0_49], %111 {strides = array<i32>} : memref<8x8xf32, #tpu.memory_space<vmem>>, vector<1x8xf32>,
    %c5 = arith.constant 5 : index
    %c0_50 = arith.constant 0 : index
    %c0_51 = arith.constant 0 : index
    %113 = vector.load %arg1[%c5, %c0_50, %c0_51] : memref<8x8x32xf32, #tpu.memory_space<vmem>>, vector<1x8x32xf32>
    %114 = vector.shape_cast %113 : vector<1x8x32xf32> to vector<8x32xf32>
    %cst_52 = arith.constant dense<0.000000e+00> : vector<16x8xf32>
    %115 = tpu.matmul %0, %114, %cst_52 {dimension_numbers = #tpu.dot_dimension_numbers<[1], [1], [0], [0], [0, 0, 1, 0], [], []>} : vector<16x32xf32>, vector<8x32xf32>, vector<16x8xf32> -> vector<16x8xf32>
    %116 = vector.broadcast %1 : vector<16x1xf32> to vector<16x8xf32>
    %117 = arith.addf %115, %116 : vector<16x8xf32>
    %cst_53 = arith.constant 0.000000e+00 : f32
    %118 = vector.broadcast %cst_53 : f32 to vector<16x8xf32>
    %119 = arith.maximumf %117, %118 : vector<16x8xf32>
    %120 = vector.broadcast %2 : vector<16x1xf32> to vector<16x8xf32>
    %121 = arith.mulf %119, %120 : vector<16x8xf32>
    %cst_54 = arith.constant dense<0.000000e+00> : vector<8xf32>
    %122 = vector.multi_reduction <add>, %121, %cst_54 [0] : vector<16x8xf32> to vector<8xf32>
    %123 = vector.shape_cast %122 : vector<8xf32> to vector<1x8xf32>
    %cst_55 = arith.constant dense<0xFF800000> : vector<1xf32>
    %124 = vector.multi_reduction <maximumf>, %123, %cst_55 [1] : vector<1x8xf32> to vector<1xf32>
    %125 = vector.shape_cast %124 : vector<1xf32> to vector<1x1xf32>
    %126 = vector.broadcast %125 : vector<1x1xf32> to vector<1x8xf32>
    %127 = arith.subf %123, %126 : vector<1x8xf32>
    %128 = math.exp %127 : vector<1x8xf32>
    %cst_56 = arith.constant dense<0.000000e+00> : vector<1xf32>
    %129 = vector.multi_reduction <add>, %128, %cst_56 [1] : vector<1x8xf32> to vector<1xf32>
    %130 = vector.shape_cast %129 : vector<1xf32> to vector<1x1xf32>
    %131 = tpu.reciprocal %130 : vector<1x1xf32> -> vector<1x1xf32>
    %132 = vector.broadcast %131 : vector<1x1xf32> to vector<1x8xf32>
    %133 = arith.mulf %128, %132 : vector<1x8xf32>
    %c5_57 = arith.constant 5 : index
    %c0_58 = arith.constant 0 : index
    %134 = vector.load %arg5[%c5_57, %c0_58] : memref<8x8xf32, #tpu.memory_space<vmem>>, vector<1x8xf32>
    tpu.vector_store %arg5[%c5_57, %c0_58], %133 {strides = array<i32>} : memref<8x8xf32, #tpu.memory_space<vmem>>, vector<1x8xf32>,
    %c6 = arith.constant 6 : index
    %c0_59 = arith.constant 0 : index
    %c0_60 = arith.constant 0 : index
    %135 = vector.load %arg1[%c6, %c0_59, %c0_60] : memref<8x8x32xf32, #tpu.memory_space<vmem>>, vector<1x8x32xf32>
    %136 = vector.shape_cast %135 : vector<1x8x32xf32> to vector<8x32xf32>
    %cst_61 = arith.constant dense<0.000000e+00> : vector<16x8xf32>
    %137 = tpu.matmul %0, %136, %cst_61 {dimension_numbers = #tpu.dot_dimension_numbers<[1], [1], [0], [0], [0, 0, 1, 0], [], []>} : vector<16x32xf32>, vector<8x32xf32>, vector<16x8xf32> -> vector<16x8xf32>
    %138 = vector.broadcast %1 : vector<16x1xf32> to vector<16x8xf32>
    %139 = arith.addf %137, %138 : vector<16x8xf32>
    %cst_62 = arith.constant 0.000000e+00 : f32
    %140 = vector.broadcast %cst_62 : f32 to vector<16x8xf32>
    %141 = arith.maximumf %139, %140 : vector<16x8xf32>
    %142 = vector.broadcast %2 : vector<16x1xf32> to vector<16x8xf32>
    %143 = arith.mulf %141, %142 : vector<16x8xf32>
    %cst_63 = arith.constant dense<0.000000e+00> : vector<8xf32>
    %144 = vector.multi_reduction <add>, %143, %cst_63 [0] : vector<16x8xf32> to vector<8xf32>
    %145 = vector.shape_cast %144 : vector<8xf32> to vector<1x8xf32>
    %cst_64 = arith.constant dense<0xFF800000> : vector<1xf32>
    %146 = vector.multi_reduction <maximumf>, %145, %cst_64 [1] : vector<1x8xf32> to vector<1xf32>
    %147 = vector.shape_cast %146 : vector<1xf32> to vector<1x1xf32>
    %148 = vector.broadcast %147 : vector<1x1xf32> to vector<1x8xf32>
    %149 = arith.subf %145, %148 : vector<1x8xf32>
    %150 = math.exp %149 : vector<1x8xf32>
    %cst_65 = arith.constant dense<0.000000e+00> : vector<1xf32>
    %151 = vector.multi_reduction <add>, %150, %cst_65 [1] : vector<1x8xf32> to vector<1xf32>
    %152 = vector.shape_cast %151 : vector<1xf32> to vector<1x1xf32>
    %153 = tpu.reciprocal %152 : vector<1x1xf32> -> vector<1x1xf32>
    %154 = vector.broadcast %153 : vector<1x1xf32> to vector<1x8xf32>
    %155 = arith.mulf %150, %154 : vector<1x8xf32>
    %c6_66 = arith.constant 6 : index
    %c0_67 = arith.constant 0 : index
    %156 = vector.load %arg5[%c6_66, %c0_67] : memref<8x8xf32, #tpu.memory_space<vmem>>, vector<1x8xf32>
    tpu.vector_store %arg5[%c6_66, %c0_67], %155 {strides = array<i32>} : memref<8x8xf32, #tpu.memory_space<vmem>>, vector<1x8xf32>,
    %c7 = arith.constant 7 : index
    %c0_68 = arith.constant 0 : index
    %c0_69 = arith.constant 0 : index
    %157 = vector.load %arg1[%c7, %c0_68, %c0_69] : memref<8x8x32xf32, #tpu.memory_space<vmem>>, vector<1x8x32xf32>
    %158 = vector.shape_cast %157 : vector<1x8x32xf32> to vector<8x32xf32>
    %cst_70 = arith.constant dense<0.000000e+00> : vector<16x8xf32>
    %159 = tpu.matmul %0, %158, %cst_70 {dimension_numbers = #tpu.dot_dimension_numbers<[1], [1], [0], [0], [0, 0, 1, 0], [], []>} : vector<16x32xf32>, vector<8x32xf32>, vector<16x8xf32> -> vector<16x8xf32>
    %160 = vector.broadcast %1 : vector<16x1xf32> to vector<16x8xf32>
    %161 = arith.addf %159, %160 : vector<16x8xf32>
    %cst_71 = arith.constant 0.000000e+00 : f32
    %162 = vector.broadcast %cst_71 : f32 to vector<16x8xf32>
    %163 = arith.maximumf %161, %162 : vector<16x8xf32>
    %164 = vector.broadcast %2 : vector<16x1xf32> to vector<16x8xf32>
    %165 = arith.mulf %163, %164 : vector<16x8xf32>
    %cst_72 = arith.constant dense<0.000000e+00> : vector<8xf32>
    %166 = vector.multi_reduction <add>, %165, %cst_72 [0] : vector<16x8xf32> to vector<8xf32>
    %167 = vector.shape_cast %166 : vector<8xf32> to vector<1x8xf32>
    %cst_73 = arith.constant dense<0xFF800000> : vector<1xf32>
    %168 = vector.multi_reduction <maximumf>, %167, %cst_73 [1] : vector<1x8xf32> to vector<1xf32>
    %169 = vector.shape_cast %168 : vector<1xf32> to vector<1x1xf32>
    %170 = vector.broadcast %169 : vector<1x1xf32> to vector<1x8xf32>
    %171 = arith.subf %167, %170 : vector<1x8xf32>
    %172 = math.exp %171 : vector<1x8xf32>
    %cst_74 = arith.constant dense<0.000000e+00> : vector<1xf32>
    %173 = vector.multi_reduction <add>, %172, %cst_74 [1] : vector<1x8xf32> to vector<1xf32>
    %174 = vector.shape_cast %173 : vector<1xf32> to vector<1x1xf32>
    %175 = tpu.reciprocal %174 : vector<1x1xf32> -> vector<1x1xf32>
    %176 = vector.broadcast %175 : vector<1x1xf32> to vector<1x8xf32>
    %177 = arith.mulf %172, %176 : vector<1x8xf32>
    %c7_75 = arith.constant 7 : index
    %c0_76 = arith.constant 0 : index
    %178 = vector.load %arg5[%c7_75, %c0_76] : memref<8x8xf32, #tpu.memory_space<vmem>>, vector<1x8xf32>
    tpu.vector_store %arg5[%c7_75, %c0_76], %177 {strides = array<i32>} : memref<8x8xf32, #tpu.memory_space<vmem>>, vector<1x8xf32>,
    return
  }
  func.func @transform_0(%arg0: i32) -> (i32, i32, i32) {
    %c0_i32 = arith.constant 0 : i32
    %c0_i32_0 = arith.constant 0 : i32
    %c0_i32_1 = arith.constant 0 : i32
    return %arg0, %c0_i32, %c0_i32_0 : i32, i32, i32
  }
  func.func @transform_1(%arg0: i32) -> (i32, i32) {
    %c0_i32 = arith.constant 0 : i32
    %c0_i32_0 = arith.constant 0 : i32
    %c0_i32_1 = arith.constant 0 : i32
    return %c0_i32, %c0_i32_0 : i32, i32
  }
  func.func @transform_2(%arg0: i32) -> (i32, i32) {
    %c0_i32 = arith.constant 0 : i32
    %c0_i32_0 = arith.constant 0 : i32
    %c0_i32_1 = arith.constant 0 : i32
    return %c0_i32, %c0_i32_0 : i32, i32
  }
  func.func @transform_3(%arg0: i32) -> (i32, i32) {
    %c0_i32 = arith.constant 0 : i32
    %c0_i32_0 = arith.constant 0 : i32
    %c0_i32_1 = arith.constant 0 : i32
    return %c0_i32, %c0_i32_0 : i32, i32
  }
  func.func @transform_4(%arg0: i32) -> (i32, i32) {
    %c0_i32 = arith.constant 0 : i32
    %c0_i32_0 = arith.constant 0 : i32
    return %arg0, %c0_i32 : i32, i32
  }
}

</mosaic_0001>

<llo_original>
// kernel: tpu_custom_call.1
$region0: #{tpu_custom_call.1}
  #allocation0 [shape = 'u32[]', space=smem, size = 0x4, offset = 0x4, fixed_abs, tag = 'smem constant byte address 0x4 - core index']
  #allocation1 [shape = 'u32[72,128]{1,0:T(1,128)}', space=vmem, size = 0x9000, scoped, tag = 'internal scratch']
  %s0 = inlined_call_operand.hbm [shape: f32[16,8,32], index: 0, kind: input, shape index: {}]
  %s1 = inlined_call_operand.vmem [shape: f32[16,32], index: 1, kind: input, shape index: {}]
  %s2 = inlined_call_operand.vmem [shape: f32[16,1], index: 2, kind: input, shape index: {}]
  %s3 = inlined_call_operand.vmem [shape: f32[16,1], index: 3, kind: input, shape index: {}]
  %s4 = inlined_call_operand.vmem [shape: f32[16,8], index: 4, kind: output, shape index: {}]
  %s5 = sld [smem:[#allocation0]]
  $region53: #{tpu_custom_call.1} parent=0
    _
  %s7 = ssub.s32 1, %s5
  %s8 = scalar_select 0, %s7, %s5
  $region1: #{tpu_custom_call.1} parent=0
    #allocation2 [shape = 'u8[65536]{0}', space=vmem, size = 0x10000, scoped, tag = 'input window, operand 0']
    #allocation3 [shape = 's32[2]{0}', space=sflag, size = 0x8, scoped, tag = 'scoped memory for tpu_custom_call.1']
    %9 = vsyncpa [#allocation3], 0
    %s10 = scalar_lea.sflag [#allocation3], 1
    %11 = vsyncpa %s10, 0
    loop: start=0, step=1, limit=4
    $region2: #{tpu_custom_call.1} parent=1 // loop_pre_header
      _
    $region3: #{tpu_custom_call.1} parent=1 // loop_header
      %s13 = sphi 0, %s17
      %p14 = scmp.ge.s32.totalorder %s13, 4
      %s23 = sphi 0, %s25
      %s26 = sphi 0, %s23
      %s27 = sphi 0, %s26
      %s43 = sphi 0, %s27
      %s47 = sphi 0, %s47
      %s49 = sphi 0, %s47
      %s50 = sphi 0, %s49
      %s64 = sphi 0, %s50
      %s68 = sphi 0, %s68
      %s70 = sphi 0, %s68
      %s71 = sphi 0, %s70
      %s85 = sphi 0, %s71
      %s89 = sphi 0, %s89
      %s91 = sphi 0, %s89
      %s92 = sphi 0, %s91
      %s106 = sphi 0, %s92
      %s112 = sphi 0, %s114
      %s115 = sphi 0, %s112
      %s116 = sphi 0, %s115
      %s132 = sphi 0, %s116
    $region4: #{tpu_custom_call.1} parent=1 // loop_header_branch
      %16 = sbr.rel (%p14) target = $region8
    $region5: #{tpu_custom_call.1} parent=1 // loop_body
      %s18 = ssub.s32 %s13, 1
      %s19 = ssub.s32 %s13, 2
      %s20 = sadd.s32 %s13, 1
      %s21 = ssub.s32 %s13, %s20
      %p22 = scmp.eq.s32.totalorder %s21, 0
      %s24 = sadd.s32 %s23, 1
      %s25 = scalar_select %p22, %s23, %s24
      %p28 = pneg %p22
      %p29 = scmp.eq.s32.totalorder %s13, 1
      %p30 = por %p28, %p29
      %p31 = scmp.ne.s32.totalorder %s23, %s26
      %p32 = scmp.eq.s32.totalorder %s13, 0
      %p33 = por %p31, %p32
      %p34 = scmp.ne.s32.totalorder %s23, %s26
      %p35 = scmp.eq.s32.totalorder %s18, 1
      %p36 = por %p34, %p35
      %p37 = scmp.ne.s32.totalorder %s26, %s27
      %p38 = scmp.eq.s32.totalorder %s18, 0
      %p39 = por %p37, %p38
      %p40 = scmp.ne.s32.totalorder %s26, %s27
      %p41 = scmp.eq.s32.totalorder %s19, 1
      %p42 = por %p40, %p41
      %p44 = scmp.ne.s32.totalorder %s27, %s43
      %p45 = scmp.eq.s32.totalorder %s19, 0
      %p46 = por %p44, %p45
      %s48 = sadd.s32 %s47, 1
      %p51 = scmp.eq.s32.totalorder %s13, 1
      %p52 = scmp.ne.s32.totalorder %s47, %s49
      %p53 = scmp.eq.s32.totalorder %s13, 0
      %p54 = por %p52, %p53
      %p55 = scmp.ne.s32.totalorder %s47, %s49
      %p56 = scmp.eq.s32.totalorder %s18, 1
      %p57 = por %p55, %p56
      %p58 = scmp.ne.s32.totalorder %s49, %s50
      %p59 = scmp.eq.s32.totalorder %s18, 0
      %p60 = por %p58, %p59
      %p61 = scmp.ne.s32.totalorder %s49, %s50
      %p62 = scmp.eq.s32.totalorder %s19, 1
      %p63 = por %p61, %p62
      %p65 = scmp.ne.s32.totalorder %s50, %s64
      %p66 = scmp.eq.s32.totalorder %s19, 0
      %p67 = por %p65, %p66
      %s69 = sadd.s32 %s68, 1
      %p72 = scmp.eq.s32.totalorder %s13, 1
      %p73 = scmp.ne.s32.totalorder %s68, %s70
      %p74 = scmp.eq.s32.totalorder %s13, 0
      %p75 = por %p73, %p74
      %p76 = scmp.ne.s32.totalorder %s68, %s70
      %p77 = scmp.eq.s32.totalorder %s18, 1
      %p78 = por %p76, %p77
      %p79 = scmp.ne.s32.totalorder %s70, %s71
      %p80 = scmp.eq.s32.totalorder %s18, 0
      %p81 = por %p79, %p80
      %p82 = scmp.ne.s32.totalorder %s70, %s71
      %p83 = scmp.eq.s32.totalorder %s19, 1
      %p84 = por %p82, %p83
      %p86 = scmp.ne.s32.totalorder %s71, %s85
      %p87 = scmp.eq.s32.totalorder %s19, 0
      %p88 = por %p86, %p87
      %s90 = sadd.s32 %s89, 1
      %p93 = scmp.eq.s32.totalorder %s13, 1
      %p94 = scmp.ne.s32.totalorder %s89, %s91
      %p95 = scmp.eq.s32.totalorder %s13, 0
      %p96 = por %p94, %p95
      %p97 = scmp.ne.s32.totalorder %s89, %s91
      %p98 = scmp.eq.s32.totalorder %s18, 1
      %p99 = por %p97, %p98
      %p100 = scmp.ne.s32.totalorder %s91, %s92
      %p101 = scmp.eq.s32.totalorder %s18, 0
      %p102 = por %p100, %p101
      %p103 = scmp.ne.s32.totalorder %s91, %s92
      %p104 = scmp.eq.s32.totalorder %s19, 1
      %p105 = por %p103, %p104
      %p107 = scmp.ne.s32.totalorder %s92, %s106
      %p108 = scmp.eq.s32.totalorder %s19, 0
      %p109 = por %p107, %p108
      %s110 = ssub.s32 %s13, %s20
      %p111 = scmp.eq.s32.totalorder %s110, 0
      %s113 = sadd.s32 %s112, 1
      %s114 = scalar_select %p111, %s112, %s113
      %p117 = pneg %p111
      %p118 = scmp.eq.s32.totalorder %s13, 1
      %p119 = por %p117, %p118
      %p120 = scmp.ne.s32.totalorder %s112, %s115
      %p121 = scmp.eq.s32.totalorder %s13, 0
      %p122 = por %p120, %p121
      %p123 = scmp.ne.s32.totalorder %s112, %s115
      %p124 = scmp.eq.s32.totalorder %s18, 1
      %p125 = por %p123, %p124
      %p126 = scmp.ne.s32.totalorder %s115, %s116
      %p127 = scmp.eq.s32.totalorder %s18, 0
      %p128 = por %p126, %p127
      %p129 = scmp.ne.s32.totalorder %s115, %s116
      %p130 = scmp.eq.s32.totalorder %s19, 1
      %p131 = por %p129, %p130
      %p133 = scmp.ne.s32.totalorder %s116, %s132
      %p134 = scmp.eq.s32.totalorder %s19, 0
      %p135 = por %p133, %p134
      %p136 = scmp.le.s32.totalorder 1, %s13
      %p137 = scmp.lt.s32.totalorder %s13, 3
      %p138 = pnand %p136, %p137
      %p139 = pneg %p138
      // Predicated region
      $region9: #{tpu_custom_call.1} parent=5 // pred_check
        _
      $region10: #{tpu_custom_call.1} parent=5 // pred_check_branch
        %141 = sbr.rel (%p138) target = $region12
      $region11: #{tpu_custom_call.1} parent=5 // pred_region
        %s142 = ssub.s32 %s13, 1
        // Predicated region
        $region13: #{tpu_custom_call.1} parent=11 // pred_check
          %p143 = pneg %p60
        $region14: #{tpu_custom_call.1} parent=11 // pred_check_branch
          %145 = sbr.rel (%p143) target = $region16
        $region15: #{tpu_custom_call.1} parent=11 // pred_region
          _
        $region16: #{tpu_custom_call.1} parent=11 // pred_fallthru
          _
        // Predicated region
        $region17: #{tpu_custom_call.1} parent=11 // pred_check
          %p146 = pneg %p81
        $region18: #{tpu_custom_call.1} parent=11 // pred_check_branch
          %148 = sbr.rel (%p146) target = $region20
        $region19: #{tpu_custom_call.1} parent=11 // pred_region
          _
        $region20: #{tpu_custom_call.1} parent=11 // pred_fallthru
          _
        // Predicated region
        $region21: #{tpu_custom_call.1} parent=11 // pred_check
          %p149 = pneg %p102
        $region22: #{tpu_custom_call.1} parent=11 // pred_check_branch
          %151 = sbr.rel (%p149) target = $region24
        $region23: #{tpu_custom_call.1} parent=11 // pred_region
          _
        $region24: #{tpu_custom_call.1} parent=11 // pred_fallthru
          _
      $region12: #{tpu_custom_call.1} parent=5 // pred_fallthru
        _
      %p152 = scmp.lt.s32.totalorder %s13, 2
      // Predicated region
      $region25: #{tpu_custom_call.1} parent=5 // pred_check
        %p153 = pneg %p152
      $region26: #{tpu_custom_call.1} parent=5 // pred_check_branch
        %155 = sbr.rel (%p153) target = $region28
      $region27: #{tpu_custom_call.1} parent=5 // pred_region
        // Predicated region
        $region29: #{tpu_custom_call.1} parent=27 // pred_check
          %p156 = pneg %p33
        $region30: #{tpu_custom_call.1} parent=27 // pred_check_branch
          %158 = sbr.rel (%p156) target = $region32
        $region31: #{tpu_custom_call.1} parent=27 // pred_region
          %s159 = sand.u32 %s23, 1
          %s160 = scalar_lea.sflag [#allocation3], %s159
          %s161 = sand.u32 %s23, 1
          %s162 = smul.addr %s161, 64
          %s163 = scalar_lea.vmem [#allocation2], %s162
          %s164 = smul.u32 8, %s13
          %166 = vsyncadd %s160, 0
          %s167 = smul.addr %s164, 8
          %s168 = scalar_lea.hbm %s0, %s167
          %s169 = sshll.u32 %s168, 4
          %s170 = int_to_ptr.hbm [resolvable:$true] %s169
          %s171 = sshll.u32 %s163, 4
          %s172 = int_to_ptr.vmem [resolvable:$true] %s171
          %177 = dma.hbm_to_vmem [thread:$0]  %s170, 1024, %s172, %s160, 128, 128, 8
        $region32: #{tpu_custom_call.1} parent=27 // pred_fallthru
          _
      $region28: #{tpu_custom_call.1} parent=5 // pred_fallthru
        _
      %p178 = scmp.le.s32.totalorder 1, %s13
      %p179 = scmp.lt.s32.totalorder %s13, 3
      %p180 = pnand %p178, %p179
      %p181 = pneg %p180
      // Predicated region
      $region33: #{tpu_custom_call.1} parent=5 // pred_check
        _
      $region34: #{tpu_custom_call.1} parent=5 // pred_check_branch
        %183 = sbr.rel (%p180) target = $region36
      $region35: #{tpu_custom_call.1} parent=5 // pred_region
        %s184 = ssub.s32 %s13, 1
        %s185 = sand.u32 %s26, 1
        %s186 = scalar_lea.sflag [#allocation3], %s185
        %s187 = sand.u32 %s26, 1
        %s188 = smul.addr %s187, 64
        %s189 = scalar_lea.vmem [#allocation2], %s188
        // Predicated region
        $region37: #{tpu_custom_call.1} parent=35 // pred_check
          %p190 = pneg %p39
        $region38: #{tpu_custom_call.1} parent=35 // pred_check_branch
          %192 = sbr.rel (%p190) target = $region40
        $region39: #{tpu_custom_call.1} parent=35 // pred_region
          %194 = dma.done %s186, 1024
        $region40: #{tpu_custom_call.1} parent=35 // pred_fallthru
          _
        %s195 = sand.u32 %s26, 1
        %s196 = scalar_lea.sflag [#allocation3], %s195
        %s197 = sand.u32 %s26, 1
        %s198 = smul.addr %s197, 64
        %s199 = scalar_lea.vmem [#allocation2], %s198
        %p200 = pneg %p39
        %p201 = pneg %p36
        %p202 = pneg %p60
        %p203 = pneg %p57
        %p204 = pneg %p81
        %p205 = pneg %p78
        %p206 = pneg %p102
        %p207 = pneg %p99
        %p208 = pneg %p128
        %p209 = pneg %p125
        %p210 = scmp.lt.s32.totalorder %s18, 1
        %s211 = scalar_select %p210, %s18, 1
        %s212 = smul.addr %s211, 8
        %s213 = scalar_lea.vmem %s4, %s212
        %s214 = smul.u32 8, %s18
        %p215 = scmp.lt.s32.totalorder %s18, 1
        %s216 = scalar_select %p215, %s18, 1
        %s217 = smul.addr %s216, 8
        %s218 = scalar_lea.vmem %s4, %s217
        %v219 = vld [vmem:[%s1] sm:$0xff]
        %v220 = vld [vmem:[%s1 + $0x8] sm:$0xff]
        %v221 = vld [vmem:[%s2] sm:$0xff]
        %v222 = vld [vmem:[%s2 + $0x8] sm:$0xff]
        %v223 = vld [vmem:[%s3] sm:$0xff]
        %v224 = vld [vmem:[%s3 + $0x8] sm:$0xff]
        %v225 = vld [vmem:[%s189] sm:$0xff]
        %227 = vset.pattern.permute.xlu0 0
        %228 = vperm.xlu0 %227, %v221
        %v229 = vpop.permute.xlu0 %228
        %232 = vset.pattern.permute.xlu0 0
        %233 = vperm.xlu0 %232, %v222
        %v234 = vpop.permute.xlu0 %233
        %vm236 = vcmask 261120
        %v238 = vsel %vm236, %v219, 0
        %v241 = vsel %vm236, %v220, 0
        %v244 = vsel %vm236, %v225, 0
        %246 = vmatpush.xpose.msra.mxu0 0.0
        %247 = vmatpush.xpose.msra.mxu0 0.0
        %248 = vmatpush.xpose.msra.mxu0 0.0
        %249 = vmatpush.xpose.msra.mxu0 0.0
        %250 = vmatpush.xpose.msra.mxu0 0.0
        %251 = vmatpush.xpose.msra.mxu0 0.0
        %252 = vmatpush.xpose.msra.mxu0 0.0
        %253 = vmatpush.xpose.msra.mxu0 0.0
        %254 = vmatpush.xpose.msra.mxu0 0.0
        %255 = vmatpush.xpose.msra.mxu0 0.0
        %256 = vmatpush.xpose.msra.mxu0 0.0
        %257 = vmatpush.xpose.msra.mxu0 0.0
        %258 = vmatpush.xpose.msra.mxu0 0.0
        %259 = vmatpush.xpose.msra.mxu0 0.0
        %260 = vmatpush.xpose.msra.mxu0 0.0
        %261 = vmatpush.xpose.msra.mxu0 %v244
        %262 = vmatmul.f32.gmra.mxu0 %v238
        %v263 = vpop.f32.mrf.mxu0
        %v264 = vadd.f32 %v229, %v263
        %265 = vmatmul.f32.gmra.mxu0 %v241
        %v266 = vpop.f32.mrf.mxu0
        %v267 = vadd.f32 %v234, %v266
        %268 = vdwg.mxu0
        %v269 = vmax.f32 %v264, 0.0
        %v270 = vmax.f32 %v267, 0.0
        %272 = vset.pattern.permute.xlu0 0
        %273 = vperm.xlu0 %272, %v223
        %v274 = vpop.permute.xlu0 %273
        %277 = vset.pattern.permute.xlu0 0
        %278 = vperm.xlu0 %277, %v224
        %v279 = vpop.permute.xlu0 %278
        %v281 = vmul.f32 %v269, %v274
        %v282 = vmul.f32 %v270, %v279
        %vm283 = vcmask 64512
        %v284 = vsel %vm283, %v281, 0.0
        %v285 = vsel %vm283, %v282, 0.0
        %v286 = vadd.f32 %v284, %v285
        %v287 = vrot.slane %v286, 4
        %v288 = vadd.f32 %v286, %v287
        %v289 = vrot.slane %v288, 2
        %v290 = vadd.f32 %v288, %v289
        %v291 = vrot.slane %v290, 1
        %v292 = vadd.f32 %v290, %v291
        %v293 = vsel %vm283, %v292, -inf
        %294 = vmax.xlane.f32.xlu0 %v293
        %v295 = vpop.xlane.xlu0 %294
        %v296 = vsub.f32 %v292, %v295
        %v297 = vmul.f32 %v296, 1.442695
        %v298 = vpow.pop %v297
        %v299 = vsel %vm283, %v298, 0.0
        %300 = vadd.xlane.f32.xlu0 %v299
        %v301 = vpop.xlane.xlu0 %300
        %v302 = vrcp.pop %v301
        %v303 = vmul.f32 %v301, %v302
        %v304 = vsub.f32 1.0, %v303
        %v305 = vmul.f32 %v302, %v304
        %v306 = vadd.f32 %v302, %v305
        %vm307 = vweird.f32 %v301
        %vm308 = vweird.f32 %v302
        %vm309 = vmor %vm307, %vm308
        %v310 = vsel %vm309, %v302, %v306
        %v311 = vand.u32 2147483647, %v301
        %vm312 = vcmp.eq.f32.partialorder %v311, 8.507059e+37
        %v313 = vand.u32 %v301, 2147483648
        %v314 = vor.u32 1.1754944e-38, %v313
        %v315 = vsel %vm312, %v314, %v310
        %v316 = vmul.f32 %v298, %v315
        %vm317 = vcmask 57344
        %318 = vst.msk [vmem:[%s218] sm:$0x1] %vm317, %v316
        %s319 = scalar_lea.vmem %s189, 8 [#allocation2]
        %v320 = vld [vmem:[%s319] sm:$0xff]
        %v322 = vsel %vm236, %v320, 0
        %324 = vmatpush.xpose.msra.mxu0 0.0
        %325 = vmatpush.xpose.msra.mxu0 0.0
        %326 = vmatpush.xpose.msra.mxu0 0.0
        %327 = vmatpush.xpose.msra.mxu0 0.0
        %328 = vmatpush.xpose.msra.mxu0 0.0
        %329 = vmatpush.xpose.msra.mxu0 0.0
        %330 = vmatpush.xpose.msra.mxu0 0.0
        %331 = vmatpush.xpose.msra.mxu0 0.0
        %332 = vmatpush.xpose.msra.mxu0 0.0
        %333 = vmatpush.xpose.msra.mxu0 0.0
        %334 = vmatpush.xpose.msra.mxu0 0.0
        %335 = vmatpush.xpose.msra.mxu0 0.0
        %336 = vmatpush.xpose.msra.mxu0 0.0
        %337 = vmatpush.xpose.msra.mxu0 0.0
        %338 = vmatpush.xpose.msra.mxu0 0.0
        %339 = vmatpush.xpose.msra.mxu0 %v322
        %340 = vmatmul.f32.gmra.mxu0 %v238
        %v341 = vpop.f32.mrf.mxu0
        %v342 = vadd.f32 %v229, %v341
        %343 = vmatmul.f32.gmra.mxu0 %v241
        %v344 = vpop.f32.mrf.mxu0
        %v345 = vadd.f32 %v234, %v344
        %346 = vdwg.mxu0
        %v347 = vmax.f32 %v342, 0.0
        %v348 = vmax.f32 %v345, 0.0
        %v349 = vmul.f32 %v347, %v274
        %v350 = vmul.f32 %v348, %v279
        %v351 = vsel %vm283, %v349, 0.0
        %v352 = vsel %vm283, %v350, 0.0
        %v353 = vadd.f32 %v351, %v352
        %v354 = vrot.slane %v353, 4
        %v355 = vadd.f32 %v353, %v354
        %v356 = vrot.slane %v355, 2
        %v357 = vadd.f32 %v355, %v356
        %v358 = vrot.slane %v357, 1
        %v359 = vadd.f32 %v357, %v358
        %v360 = vsel %vm283, %v359, -inf
        %361 = vmax.xlane.f32.xlu0 %v360
        %v362 = vpop.xlane.xlu0 %361
        %v363 = vsub.f32 %v359, %v362
        %v364 = vmul.f32 %v363, 1.442695
        %v365 = vpow.pop %v364
        %v366 = vsel %vm283, %v365, 0.0
        %367 = vadd.xlane.f32.xlu0 %v366
        %v368 = vpop.xlane.xlu0 %367
        %v369 = vrcp.pop %v368
        %v370 = vmul.f32 %v368, %v369
        %v371 = vsub.f32 1.0, %v370
        %v372 = vmul.f32 %v369, %v371
        %v373 = vadd.f32 %v369, %v372
        %vm374 = vweird.f32 %v368
        %vm375 = vweird.f32 %v369
        %vm376 = vmor %vm374, %vm375
        %v377 = vsel %vm376, %v369, %v373
        %v378 = vand.u32 2147483647, %v368
        %vm379 = vcmp.eq.f32.partialorder %v378, 8.507059e+37
        %v380 = vand.u32 %v368, 2147483648
        %v381 = vor.u32 1.1754944e-38, %v380
        %v382 = vsel %vm379, %v381, %v377
        %v383 = vmul.f32 %v365, %v382
        %384 = vst.msk [vmem:[%s218 + $0x1] sm:$0x1] %vm317, %v383
        %s385 = scalar_lea.vmem %s189, 16 [#allocation2]
        %v386 = vld [vmem:[%s385] sm:$0xff]
        %v388 = vsel %vm236, %v386, 0
        %390 = vmatpush.xpose.msra.mxu0 0.0
        %391 = vmatpush.xpose.msra.mxu0 0.0
        %392 = vmatpush.xpose.msra.mxu0 0.0
        %393 = vmatpush.xpose.msra.mxu0 0.0
        %394 = vmatpush.xpose.msra.mxu0 0.0
        %395 = vmatpush.xpose.msra.mxu0 0.0
        %396 = vmatpush.xpose.msra.mxu0 0.0
        %397 = vmatpush.xpose.msra.mxu0 0.0
        %398 = vmatpush.xpose.msra.mxu0 0.0
        %399 = vmatpush.xpose.msra.mxu0 0.0
        %400 = vmatpush.xpose.msra.mxu0 0.0
        %401 = vmatpush.xpose.msra.mxu0 0.0
        %402 = vmatpush.xpose.msra.mxu0 0.0
        %403 = vmatpush.xpose.msra.mxu0 0.0
        %404 = vmatpush.xpose.msra.mxu0 0.0
        %405 = vmatpush.xpose.msra.mxu0 %v388
        %406 = vmatmul.f32.gmra.mxu0 %v238
        %v407 = vpop.f32.mrf.mxu0
        %v408 = vadd.f32 %v229, %v407
        %409 = vmatmul.f32.gmra.mxu0 %v241
        %v410 = vpop.f32.mrf.mxu0
        %v411 = vadd.f32 %v234, %v410
        %412 = vdwg.mxu0
        %v413 = vmax.f32 %v408, 0.0
        %v414 = vmax.f32 %v411, 0.0
        %v415 = vmul.f32 %v413, %v274
        %v416 = vmul.f32 %v414, %v279
        %v417 = vsel %vm283, %v415, 0.0
        %v418 = vsel %vm283, %v416, 0.0
        %v419 = vadd.f32 %v417, %v418
        %v420 = vrot.slane %v419, 4
        %v421 = vadd.f32 %v419, %v420
        %v422 = vrot.slane %v421, 2
        %v423 = vadd.f32 %v421, %v422
        %v424 = vrot.slane %v423, 1
        %v425 = vadd.f32 %v423, %v424
        %v426 = vsel %vm283, %v425, -inf
        %427 = vmax.xlane.f32.xlu0 %v426
        %v428 = vpop.xlane.xlu0 %427
        %v429 = vsub.f32 %v425, %v428
        %v430 = vmul.f32 %v429, 1.442695
        %v431 = vpow.pop %v430
        %v432 = vsel %vm283, %v431, 0.0
        %433 = vadd.xlane.f32.xlu0 %v432
        %v434 = vpop.xlane.xlu0 %433
        %v435 = vrcp.pop %v434
        %v436 = vmul.f32 %v434, %v435
        %v437 = vsub.f32 1.0, %v436
        %v438 = vmul.f32 %v435, %v437
        %v439 = vadd.f32 %v435, %v438
        %vm440 = vweird.f32 %v434
        %vm441 = vweird.f32 %v435
        %vm442 = vmor %vm440, %vm441
        %v443 = vsel %vm442, %v435, %v439
        %v444 = vand.u32 2147483647, %v434
        %vm445 = vcmp.eq.f32.partialorder %v444, 8.507059e+37
        %v446 = vand.u32 %v434, 2147483648
        %v447 = vor.u32 1.1754944e-38, %v446
        %v448 = vsel %vm445, %v447, %v443
        %v449 = vmul.f32 %v431, %v448
        %450 = vst.msk [vmem:[%s218 + $0x2] sm:$0x1] %vm317, %v449
        %s451 = scalar_lea.vmem %s189, 24 [#allocation2]
        %v452 = vld [vmem:[%s451] sm:$0xff]
        %v454 = vsel %vm236, %v452, 0
        %456 = vmatpush.xpose.msra.mxu0 0.0
        %457 = vmatpush.xpose.msra.mxu0 0.0
        %458 = vmatpush.xpose.msra.mxu0 0.0
        %459 = vmatpush.xpose.msra.mxu0 0.0
        %460 = vmatpush.xpose.msra.mxu0 0.0
        %461 = vmatpush.xpose.msra.mxu0 0.0
        %462 = vmatpush.xpose.msra.mxu0 0.0
        %463 = vmatpush.xpose.msra.mxu0 0.0
        %464 = vmatpush.xpose.msra.mxu0 0.0
        %465 = vmatpush.xpose.msra.mxu0 0.0
        %466 = vmatpush.xpose.msra.mxu0 0.0
        %467 = vmatpush.xpose.msra.mxu0 0.0
        %468 = vmatpush.xpose.msra.mxu0 0.0
        %469 = vmatpush.xpose.msra.mxu0 0.0
        %470 = vmatpush.xpose.msra.mxu0 0.0
        %471 = vmatpush.xpose.msra.mxu0 %v454
        %472 = vmatmul.f32.gmra.mxu0 %v238
        %v473 = vpop.f32.mrf.mxu0
        %v474 = vadd.f32 %v229, %v473
        %475 = vmatmul.f32.gmra.mxu0 %v241
        %v476 = vpop.f32.mrf.mxu0
        %v477 = vadd.f32 %v234, %v476
        %478 = vdwg.mxu0
        %v479 = vmax.f32 %v474, 0.0
        %v480 = vmax.f32 %v477, 0.0
        %v481 = vmul.f32 %v479, %v274
        %v482 = vmul.f32 %v480, %v279
        %v483 = vsel %vm283, %v481, 0.0
        %v484 = vsel %vm283, %v482, 0.0
        %v485 = vadd.f32 %v483, %v484
        %v486 = vrot.slane %v485, 4
        %v487 = vadd.f32 %v485, %v486
        %v488 = vrot.slane %v487, 2
        %v489 = vadd.f32 %v487, %v488
        %v490 = vrot.slane %v489, 1
        %v491 = vadd.f32 %v489, %v490
        %v492 = vsel %vm283, %v491, -inf
        %493 = vmax.xlane.f32.xlu0 %v492
        %v494 = vpop.xlane.xlu0 %493
        %v495 = vsub.f32 %v491, %v494
        %v496 = vmul.f32 %v495, 1.442695
        %v497 = vpow.pop %v496
        %v498 = vsel %vm283, %v497, 0.0
        %499 = vadd.xlane.f32.xlu0 %v498
        %v500 = vpop.xlane.xlu0 %499
        %v501 = vrcp.pop %v500
        %v502 = vmul.f32 %v500, %v501
        %v503 = vsub.f32 1.0, %v502
        %v504 = vmul.f32 %v501, %v503
        %v505 = vadd.f32 %v501, %v504
        %vm506 = vweird.f32 %v500
        %vm507 = vweird.f32 %v501
        %vm508 = vmor %vm506, %vm507
        %v509 = vsel %vm508, %v501, %v505
        %v510 = vand.u32 2147483647, %v500
        %vm511 = vcmp.eq.f32.partialorder %v510, 8.507059e+37
        %v512 = vand.u32 %v500, 2147483648
        %v513 = vor.u32 1.1754944e-38, %v512
        %v514 = vsel %vm511, %v513, %v509
        %v515 = vmul.f32 %v497, %v514
        %516 = vst.msk [vmem:[%s218 + $0x3] sm:$0x1] %vm317, %v515
        %s517 = scalar_lea.vmem %s189, 32 [#allocation2]
        %v518 = vld [vmem:[%s517] sm:$0xff]
        %v520 = vsel %vm236, %v518, 0
        %522 = vmatpush.xpose.msra.mxu0 0.0
        %523 = vmatpush.xpose.msra.mxu0 0.0
        %524 = vmatpush.xpose.msra.mxu0 0.0
        %525 = vmatpush.xpose.msra.mxu0 0.0
        %526 = vmatpush.xpose.msra.mxu0 0.0
        %527 = vmatpush.xpose.msra.mxu0 0.0
        %528 = vmatpush.xpose.msra.mxu0 0.0
        %529 = vmatpush.xpose.msra.mxu0 0.0
        %530 = vmatpush.xpose.msra.mxu0 0.0
        %531 = vmatpush.xpose.msra.mxu0 0.0
        %532 = vmatpush.xpose.msra.mxu0 0.0
        %533 = vmatpush.xpose.msra.mxu0 0.0
        %534 = vmatpush.xpose.msra.mxu0 0.0
        %535 = vmatpush.xpose.msra.mxu0 0.0
        %536 = vmatpush.xpose.msra.mxu0 0.0
        %537 = vmatpush.xpose.msra.mxu0 %v520
        %538 = vmatmul.f32.gmra.mxu0 %v238
        %v539 = vpop.f32.mrf.mxu0
        %v540 = vadd.f32 %v229, %v539
        %541 = vmatmul.f32.gmra.mxu0 %v241
        %v542 = vpop.f32.mrf.mxu0
        %v543 = vadd.f32 %v234, %v542
        %544 = vdwg.mxu0
        %v545 = vmax.f32 %v540, 0.0
        %v546 = vmax.f32 %v543, 0.0
        %v547 = vmul.f32 %v545, %v274
        %v548 = vmul.f32 %v546, %v279
        %v549 = vsel %vm283, %v547, 0.0
        %v550 = vsel %vm283, %v548, 0.0
        %v551 = vadd.f32 %v549, %v550
        %v552 = vrot.slane %v551, 4
        %v553 = vadd.f32 %v551, %v552
        %v554 = vrot.slane %v553, 2
        %v555 = vadd.f32 %v553, %v554
        %v556 = vrot.slane %v555, 1
        %v557 = vadd.f32 %v555, %v556
        %v558 = vsel %vm283, %v557, -inf
        %559 = vmax.xlane.f32.xlu0 %v558
        %v560 = vpop.xlane.xlu0 %559
        %v561 = vsub.f32 %v557, %v560
        %v562 = vmul.f32 %v561, 1.442695
        %v563 = vpow.pop %v562
        %v564 = vsel %vm283, %v563, 0.0
        %565 = vadd.xlane.f32.xlu0 %v564
        %v566 = vpop.xlane.xlu0 %565
        %v567 = vrcp.pop %v566
        %v568 = vmul.f32 %v566, %v567
        %v569 = vsub.f32 1.0, %v568
        %v570 = vmul.f32 %v567, %v569
        %v571 = vadd.f32 %v567, %v570
        %vm572 = vweird.f32 %v566
        %vm573 = vweird.f32 %v567
        %vm574 = vmor %vm572, %vm573
        %v575 = vsel %vm574, %v567, %v571
        %v576 = vand.u32 2147483647, %v566
        %vm577 = vcmp.eq.f32.partialorder %v576, 8.507059e+37
        %v578 = vand.u32 %v566, 2147483648
        %v579 = vor.u32 1.1754944e-38, %v578
        %v580 = vsel %vm577, %v579, %v575
        %v581 = vmul.f32 %v563, %v580
        %582 = vst.msk [vmem:[%s218 + $0x4] sm:$0x1] %vm317, %v581
        %s583 = scalar_lea.vmem %s189, 40 [#allocation2]
        %v584 = vld [vmem:[%s583] sm:$0xff]
        %v586 = vsel %vm236, %v584, 0
        %588 = vmatpush.xpose.msra.mxu0 0.0
        %589 = vmatpush.xpose.msra.mxu0 0.0
        %590 = vmatpush.xpose.msra.mxu0 0.0
        %591 = vmatpush.xpose.msra.mxu0 0.0
        %592 = vmatpush.xpose.msra.mxu0 0.0
        %593 = vmatpush.xpose.msra.mxu0 0.0
        %594 = vmatpush.xpose.msra.mxu0 0.0
        %595 = vmatpush.xpose.msra.mxu0 0.0
        %596 = vmatpush.xpose.msra.mxu0 0.0
        %597 = vmatpush.xpose.msra.mxu0 0.0
        %598 = vmatpush.xpose.msra.mxu0 0.0
        %599 = vmatpush.xpose.msra.mxu0 0.0
        %600 = vmatpush.xpose.msra.mxu0 0.0
        %601 = vmatpush.xpose.msra.mxu0 0.0
        %602 = vmatpush.xpose.msra.mxu0 0.0
        %603 = vmatpush.xpose.msra.mxu0 %v586
        %604 = vmatmul.f32.gmra.mxu0 %v238
        %v605 = vpop.f32.mrf.mxu0
        %v606 = vadd.f32 %v229, %v605
        %607 = vmatmul.f32.gmra.mxu0 %v241
        %v608 = vpop.f32.mrf.mxu0
        %v609 = vadd.f32 %v234, %v608
        %610 = vdwg.mxu0
        %v611 = vmax.f32 %v606, 0.0
        %v612 = vmax.f32 %v609, 0.0
        %v613 = vmul.f32 %v611, %v274
        %v614 = vmul.f32 %v612, %v279
        %v615 = vsel %vm283, %v613, 0.0
        %v616 = vsel %vm283, %v614, 0.0
        %v617 = vadd.f32 %v615, %v616
        %v618 = vrot.slane %v617, 4
        %v619 = vadd.f32 %v617, %v618
        %v620 = vrot.slane %v619, 2
        %v621 = vadd.f32 %v619, %v620
        %v622 = vrot.slane %v621, 1
        %v623 = vadd.f32 %v621, %v622
        %v624 = vsel %vm283, %v623, -inf
        %625 = vmax.xlane.f32.xlu0 %v624
        %v626 = vpop.xlane.xlu0 %625
        %v627 = vsub.f32 %v623, %v626
        %v628 = vmul.f32 %v627, 1.442695
        %v629 = vpow.pop %v628
        %v630 = vsel %vm283, %v629, 0.0
        %631 = vadd.xlane.f32.xlu0 %v630
        %v632 = vpop.xlane.xlu0 %631
        %v633 = vrcp.pop %v632
        %v634 = vmul.f32 %v632, %v633
        %v635 = vsub.f32 1.0, %v634
        %v636 = vmul.f32 %v633, %v635
        %v637 = vadd.f32 %v633, %v636
        %vm638 = vweird.f32 %v632
        %vm639 = vweird.f32 %v633
        %vm640 = vmor %vm638, %vm639
        %v641 = vsel %vm640, %v633, %v637
        %v642 = vand.u32 2147483647, %v632
        %vm643 = vcmp.eq.f32.partialorder %v642, 8.507059e+37
        %v644 = vand.u32 %v632, 2147483648
        %v645 = vor.u32 1.1754944e-38, %v644
        %v646 = vsel %vm643, %v645, %v641
        %v647 = vmul.f32 %v629, %v646
        %648 = vst.msk [vmem:[%s218 + $0x5] sm:$0x1] %vm317, %v647
        %s649 = scalar_lea.vmem %s189, 48 [#allocation2]
        %v650 = vld [vmem:[%s649] sm:$0xff]
        %v652 = vsel %vm236, %v650, 0
        %654 = vmatpush.xpose.msra.mxu0 0.0
        %655 = vmatpush.xpose.msra.mxu0 0.0
        %656 = vmatpush.xpose.msra.mxu0 0.0
        %657 = vmatpush.xpose.msra.mxu0 0.0
        %658 = vmatpush.xpose.msra.mxu0 0.0
        %659 = vmatpush.xpose.msra.mxu0 0.0
        %660 = vmatpush.xpose.msra.mxu0 0.0
        %661 = vmatpush.xpose.msra.mxu0 0.0
        %662 = vmatpush.xpose.msra.mxu0 0.0
        %663 = vmatpush.xpose.msra.mxu0 0.0
        %664 = vmatpush.xpose.msra.mxu0 0.0
        %665 = vmatpush.xpose.msra.mxu0 0.0
        %666 = vmatpush.xpose.msra.mxu0 0.0
        %667 = vmatpush.xpose.msra.mxu0 0.0
        %668 = vmatpush.xpose.msra.mxu0 0.0
        %669 = vmatpush.xpose.msra.mxu0 %v652
        %670 = vmatmul.f32.gmra.mxu0 %v238
        %v671 = vpop.f32.mrf.mxu0
        %v672 = vadd.f32 %v229, %v671
        %673 = vmatmul.f32.gmra.mxu0 %v241
        %v674 = vpop.f32.mrf.mxu0
        %v675 = vadd.f32 %v234, %v674
        %676 = vdwg.mxu0
        %v677 = vmax.f32 %v672, 0.0
        %v678 = vmax.f32 %v675, 0.0
        %v679 = vmul.f32 %v677, %v274
        %v680 = vmul.f32 %v678, %v279
        %v681 = vsel %vm283, %v679, 0.0
        %v682 = vsel %vm283, %v680, 0.0
        %v683 = vadd.f32 %v681, %v682
        %v684 = vrot.slane %v683, 4
        %v685 = vadd.f32 %v683, %v684
        %v686 = vrot.slane %v685, 2
        %v687 = vadd.f32 %v685, %v686
        %v688 = vrot.slane %v687, 1
        %v689 = vadd.f32 %v687, %v688
        %v690 = vsel %vm283, %v689, -inf
        %691 = vmax.xlane.f32.xlu0 %v690
        %v692 = vpop.xlane.xlu0 %691
        %v693 = vsub.f32 %v689, %v692
        %v694 = vmul.f32 %v693, 1.442695
        %v695 = vpow.pop %v694
        %v696 = vsel %vm283, %v695, 0.0
        %697 = vadd.xlane.f32.xlu0 %v696
        %v698 = vpop.xlane.xlu0 %697
        %v699 = vrcp.pop %v698
        %v700 = vmul.f32 %v698, %v699
        %v701 = vsub.f32 1.0, %v700
        %v702 = vmul.f32 %v699, %v701
        %v703 = vadd.f32 %v699, %v702
        %vm704 = vweird.f32 %v698
        %vm705 = vweird.f32 %v699
        %vm706 = vmor %vm704, %vm705
        %v707 = vsel %vm706, %v699, %v703
        %v708 = vand.u32 2147483647, %v698
        %vm709 = vcmp.eq.f32.partialorder %v708, 8.507059e+37
        %v710 = vand.u32 %v698, 2147483648
        %v711 = vor.u32 1.1754944e-38, %v710
        %v712 = vsel %vm709, %v711, %v707
        %v713 = vmul.f32 %v695, %v712
        %714 = vst.msk [vmem:[%s218 + $0x6] sm:$0x1] %vm317, %v713
        %s715 = scalar_lea.vmem %s189, 56 [#allocation2]
        %v716 = vld [vmem:[%s715] sm:$0xff]
        %v718 = vsel %vm236, %v716, 0
        %720 = vmatpush.xpose.msra.mxu0 0.0
        %721 = vmatpush.xpose.msra.mxu0 0.0
        %722 = vmatpush.xpose.msra.mxu0 0.0
        %723 = vmatpush.xpose.msra.mxu0 0.0
        %724 = vmatpush.xpose.msra.mxu0 0.0
        %725 = vmatpush.xpose.msra.mxu0 0.0
        %726 = vmatpush.xpose.msra.mxu0 0.0
        %727 = vmatpush.xpose.msra.mxu0 0.0
        %728 = vmatpush.xpose.msra.mxu0 0.0
        %729 = vmatpush.xpose.msra.mxu0 0.0
        %730 = vmatpush.xpose.msra.mxu0 0.0
        %731 = vmatpush.xpose.msra.mxu0 0.0
        %732 = vmatpush.xpose.msra.mxu0 0.0
        %733 = vmatpush.xpose.msra.mxu0 0.0
        %734 = vmatpush.xpose.msra.mxu0 0.0
        %735 = vmatpush.xpose.msra.mxu0 %v718
        %736 = vmatmul.f32.gmra.mxu0 %v238
        %v737 = vpop.f32.mrf.mxu0
        %v738 = vadd.f32 %v229, %v737
        %739 = vmatmul.f32.gmra.mxu0 %v241
        %v740 = vpop.f32.mrf.mxu0
        %v741 = vadd.f32 %v234, %v740
        %742 = vdwg.mxu0
        %v743 = vmax.f32 %v738, 0.0
        %v744 = vmax.f32 %v741, 0.0
        %v745 = vmul.f32 %v743, %v274
        %v746 = vmul.f32 %v744, %v279
        %v747 = vsel %vm283, %v745, 0.0
        %v748 = vsel %vm283, %v746, 0.0
        %v749 = vadd.f32 %v747, %v748
        %v750 = vrot.slane %v749, 4
        %v751 = vadd.f32 %v749, %v750
        %v752 = vrot.slane %v751, 2
        %v753 = vadd.f32 %v751, %v752
        %v754 = vrot.slane %v753, 1
        %v755 = vadd.f32 %v753, %v754
        %v756 = vsel %vm283, %v755, -inf
        %757 = vmax.xlane.f32.xlu0 %v756
        %v758 = vpop.xlane.xlu0 %757
        %v759 = vsub.f32 %v755, %v758
        %v760 = vmul.f32 %v759, 1.442695
        %v761 = vpow.pop %v760
        %v762 = vsel %vm283, %v761, 0.0
        %763 = vadd.xlane.f32.xlu0 %v762
        %v764 = vpop.xlane.xlu0 %763
        %v765 = vrcp.pop %v764
        %v766 = vmul.f32 %v764, %v765
        %v767 = vsub.f32 1.0, %v766
        %v768 = vmul.f32 %v765, %v767
        %v769 = vadd.f32 %v765, %v768
        %vm770 = vweird.f32 %v764
        %vm771 = vweird.f32 %v765
        %vm772 = vmor %vm770, %vm771
        %v773 = vsel %vm772, %v765, %v769
        %v774 = vand.u32 2147483647, %v764
        %vm775 = vcmp.eq.f32.partialorder %v774, 8.507059e+37
        %v776 = vand.u32 %v764, 2147483648
        %v777 = vor.u32 1.1754944e-38, %v776
        %v778 = vsel %vm775, %v777, %v773
        %v779 = vmul.f32 %v761, %v778
        %780 = vst.msk [vmem:[%s218 + $0x7] sm:$0x1] %vm317, %v779
        %p781 = scmp.lt.s32.totalorder %s18, 1
        %s782 = scalar_select %p781, %s18, 1
        %s783 = smul.addr %s782, 8
        %s784 = scalar_lea.vmem %s4, %s783
        // Predicated region
        $region41: #{tpu_custom_call.1} parent=35 // pred_check
          %p785 = pneg %p125
        $region42: #{tpu_custom_call.1} parent=35 // pred_check_branch
          %787 = sbr.rel (%p785) target = $region44
        $region43: #{tpu_custom_call.1} parent=35 // pred_region
          _
        $region44: #{tpu_custom_call.1} parent=35 // pred_fallthru
          _
      $region36: #{tpu_custom_call.1} parent=5 // pred_fallthru
        _
      %p788 = scmp.le.s32.totalorder 2, %s13
      // Predicated region
      $region45: #{tpu_custom_call.1} parent=5 // pred_check
        %p789 = pneg %p788
      $region46: #{tpu_custom_call.1} parent=5 // pred_check_branch
        %791 = sbr.rel (%p789) target = $region48
      $region47: #{tpu_custom_call.1} parent=5 // pred_region
        %s792 = ssub.s32 %s13, 2
        // Predicated region
        $region49: #{tpu_custom_call.1} parent=47 // pred_check
          %p793 = pneg %p131
        $region50: #{tpu_custom_call.1} parent=47 // pred_check_branch
          %795 = sbr.rel (%p793) target = $region52
        $region51: #{tpu_custom_call.1} parent=47 // pred_region
          %p796 = scmp.lt.s32.totalorder %s19, 1
          %s797 = scalar_select %p796, %s19, 1
          %s798 = smul.addr %s797, 8
          %s799 = scalar_lea.vmem %s4, %s798
        $region52: #{tpu_custom_call.1} parent=47 // pred_fallthru
          _
      $region48: #{tpu_custom_call.1} parent=5 // pred_fallthru
        _
    $region6: #{tpu_custom_call.1} parent=1 // loop_footer
      %s17 = sadd.s32 1, %s13
    $region7: #{tpu_custom_call.1} parent=1 // loop_footer_branch
      %12 = sbr.rel target = $region3
    $region8: #{tpu_custom_call.1} parent=1 // loop_exit
      _
    %800 = vsyncpa [#allocation3], 1
    %s801 = scalar_lea.sflag [#allocation3], 1
    %802 = vsyncpa %s801, 1

</llo_original>
